<compile_context>
chip_gen: v6e
topology: v6e:2x2x1
jax: 0.10.0
libtpu: 0.0.40
codegen_flags: <defaults>
</compile_context>

<pallas_src>
import functools
import math

import jax
import jax.numpy as jnp
from jax import lax
from jax.experimental import pallas as pl
from jax.experimental.pallas import tpu as pltpu


_VMEM_LIMIT = 32 * 1024 * 1024   # above v5e's 16 MiB default, at v6e/v7x default


# ----------------------------------------------------------------------------
# helpers
# ----------------------------------------------------------------------------

def _pick_tile(dim, candidates):
    """First candidate that divides `dim`, else the full dim (small-shape fallback)."""
    for c in candidates:
        if dim >= c and dim % c == 0:
            return c
    return dim
    # TODO(synk): padded edge tiles via pl.cdiv for very large non-divisible dims.


_SQRT_2_OVER_PI = math.sqrt(2.0 / math.pi)


def _gelu_tanh(x):
    return 0.5 * x * (1.0 + jnp.tanh(_SQRT_2_OVER_PI * (x + 0.044715 * x * x * x)))


def _nan_to_num(x):
    # torch.nan_to_num(x, nan=0.0, posinf=1.0, neginf=-1.0)
    y = jnp.where(jnp.isnan(x), jnp.float32(0.0), x)
    y = jnp.where(x == jnp.inf, jnp.float32(1.0), y)
    y = jnp.where(x == -jnp.inf, jnp.float32(-1.0), y)
    return y


# ----------------------------------------------------------------------------
# Standalone LayerNorm kernel (fallback when LN cannot be fused into a matmul)
# ----------------------------------------------------------------------------

def _layernorm_kernel(x_ref, g_ref, b_ref, o_ref, *, eps):
    x = x_ref[...].astype(jnp.float32)                       # (TM, D)
    mu = jnp.mean(x, axis=-1, keepdims=True)
    var = jnp.mean(jnp.square(x - mu), axis=-1, keepdims=True)
    y = (x - mu) * lax.rsqrt(var + eps)
    y = y * g_ref[...].astype(jnp.float32) + b_ref[...].astype(jnp.float32)
    o_ref[...] = y.astype(o_ref.dtype)


def layernorm(x2d, gamma, beta, *, eps=1e-5):
    M, D = x2d.shape
    tm = _pick_tile(M, (1024, 512, 256, 128, 64, 32, 16, 8))
    return pl.pallas_call(
        functools.partial(_layernorm_kernel, eps=eps),
        out_shape=jax.ShapeDtypeStruct((M, D), x2d.dtype),
        grid_spec=pltpu.PrefetchScalarGridSpec(
            num_scalar_prefetch=0,
            grid=(M // tm,),
            in_specs=[
                pl.BlockSpec((tm, D), lambda i: (i, 0)),
                pl.BlockSpec((1, D), lambda i: (0, 0)),
                pl.BlockSpec((1, D), lambda i: (0, 0)),
            ],
            out_specs=pl.BlockSpec((tm, D), lambda i: (i, 0)),
        ),
        compiler_params=pltpu.CompilerParams(
            dimension_semantics=("parallel",), vmem_limit_bytes=_VMEM_LIMIT),
    )(x2d, gamma.reshape(1, D), beta.reshape(1, D))


# ----------------------------------------------------------------------------
# Tiled matmul: fused LN prologue + (bias / gelu / nan_to_num / residual) epilogue
# ----------------------------------------------------------------------------

def _make_matmul_kernel(*, activation, nan_clean, has_residual, fuse_ln, ln_eps,
                        mxu_dtype):
    def kernel(*refs):
        it = iter(refs)
        x_ref = next(it)
        g_ref = next(it) if fuse_ln else None
        bln_ref = next(it) if fuse_ln else None
        w_ref = next(it)
        b_ref = next(it)
        r_ref = next(it) if has_residual else None
        o_ref = next(it)
        acc_ref = next(it)

        @pl.when(pl.program_id(2) == 0)
        def _init():
            acc_ref[...] = jnp.zeros_like(acc_ref)

        x = x_ref[...]
        if fuse_ln:
            xf = x.astype(jnp.float32)
            mu = jnp.mean(xf, axis=-1, keepdims=True)
            var = jnp.mean(jnp.square(xf - mu), axis=-1, keepdims=True)
            x = (xf - mu) * lax.rsqrt(var + ln_eps)
            x = x * g_ref[...].astype(jnp.float32) + bln_ref[...].astype(jnp.float32)
        w = w_ref[...]
        if mxu_dtype is not None:
            x = x.astype(mxu_dtype)
            w = w.astype(mxu_dtype)

        acc_ref[...] += jnp.dot(x, w, preferred_element_type=jnp.float32)

        @pl.when(pl.program_id(2) == pl.num_programs(2) - 1)
        def _epilogue():
            y = acc_ref[...] + b_ref[...].astype(jnp.float32)
            if activation == "gelu":
                y = _gelu_tanh(y)
            if nan_clean:
                y = _nan_to_num(y)
            if has_residual:
                y = y + r_ref[...].astype(jnp.float32)
            o_ref[...] = y.astype(o_ref.dtype)

    return kernel


def matmul_bias(x, w, b, *, activation=None, nan_clean=False, residual=None,
                ln=None, ln_eps=1e-5, out_dtype=None, mxu_dtype=None):
    """out = epilogue( LN?(x) @ w + b ).  ln=(gamma, beta) fuses LayerNorm."""
    M, K = x.shape
    K2, N = w.shape
    assert K == K2
    out_dtype = out_dtype or x.dtype

    tm = _pick_tile(M, (512, 256, 128, 64, 32, 16, 8))   # big tm -> weight reuse
    tn = _pick_tile(N, (512, 256, 128))
    tk = _pick_tile(K, (512, 256, 128))

    fuse_ln = (ln is not None) and (tk == K)
    if (ln is not None) and not fuse_ln:
        # K is split across tiles: cannot normalize per-tile; do a standalone pass.
        x = layernorm(x, ln[0], ln[1], eps=ln_eps)

    in_specs = [pl.BlockSpec((tm, tk), lambda i, j, k: (i, k))]
    args = [x]
    if fuse_ln:
        in_specs.append(pl.BlockSpec((1, K), lambda i, j, k: (0, 0)))   # gamma resident
        in_specs.append(pl.BlockSpec((1, K), lambda i, j, k: (0, 0)))   # beta resident
        args.append(ln[0].reshape(1, K).astype(jnp.float32))
        args.append(ln[1].reshape(1, K).astype(jnp.float32))
    in_specs.append(pl.BlockSpec((tk, tn), lambda i, j, k: (k, j)))     # weights
    in_specs.append(pl.BlockSpec((1, tn), lambda i, j, k: (0, j)))      # bias
    args.append(w)
    args.append(b.reshape(1, N))
    if residual is not None:
        in_specs.append(pl.BlockSpec((tm, tn), lambda i, j, k: (i, j)))
        args.append(residual)

    kernel = _make_matmul_kernel(activation=activation, nan_clean=nan_clean,
                                 has_residual=residual is not None,
                                 fuse_ln=fuse_ln, ln_eps=ln_eps, mxu_dtype=mxu_dtype)

    # TODO(synk): pipeline_mode=pl.Buffered(3) on the weight BlockSpec when K//tk >= 3
    #             and the weight DMA is still exposed.
    return pl.pallas_call(
        kernel,
        out_shape=jax.ShapeDtypeStruct((M, N), out_dtype),
        grid_spec=pltpu.PrefetchScalarGridSpec(
            num_scalar_prefetch=0,
            grid=(M // tm, N // tn, K // tk),
            in_specs=in_specs,
            out_specs=pl.BlockSpec((tm, tn), lambda i, j, k: (i, j)),
            scratch_shapes=[pltpu.VMEM((tm, tn), jnp.float32)],
        ),
        compiler_params=pltpu.CompilerParams(
            dimension_semantics=("parallel", "parallel", "arbitrary"),
            vmem_limit_bytes=_VMEM_LIMIT),
    )(*args)


# ----------------------------------------------------------------------------
# FAVOR+ (Performer) attention — one batch per grid step, heads unrolled inside,
# fused qkv consumed directly, output written lane-dense in (B*S, D) layout.
# ----------------------------------------------------------------------------

def _favor_attention_kernel(qkv_ref, pt_ref, o_ref, *, nhead, eps):
    proj_t = pt_ref[...].astype(jnp.float32)                  # (dh, m)
    dh, m = proj_t.shape
    d_model = nhead * dh
    qkv = qkv_ref[...].astype(jnp.float32)                    # (S, 3*d_model)
    seq = qkv.shape[0]
    dn = float(dh) ** -0.25                                   # 1/sqrt(sqrt(dh))
    ratio = float(m) ** -0.5

    outs = []
    for h in range(nhead):                                    # unrolled (nhead small)
        q = qkv[:, h * dh:(h + 1) * dh]
        k = qkv[:, d_model + h * dh:d_model + (h + 1) * dh]
        v = qkv[:, 2 * d_model + h * dh:2 * d_model + (h + 1) * dh]

        # One MXU push computes both feature maps: [q; k] @ proj_t.
        qk_dash = jnp.dot(jnp.concatenate([q, k], axis=0) * dn, proj_t,
                          preferred_element_type=jnp.float32)           # (2S, m)
        q_dash = qk_dash[:seq]
        k_dash = qk_dash[seq:]

        q_diag = (0.5 * dn * dn) * jnp.sum(q * q, axis=-1, keepdims=True)
        k_diag = (0.5 * dn * dn) * jnp.sum(k * k, axis=-1, keepdims=True)

        # phi(q): per-row max stabilisation; phi(k): per-head global max.
        q_prime = ratio * (jnp.exp(q_dash - q_diag
                                   - jnp.max(q_dash, axis=-1, keepdims=True)) + eps)
        k_max = jnp.max(jnp.max(k_dash, axis=-1, keepdims=True),
                        axis=0, keepdims=True)
        k_prime = ratio * (jnp.exp(k_dash - k_diag - k_max) + eps)

        # Non-causal linear attention.
        k_sum = jnp.sum(k_prime, axis=0, keepdims=True)                 # (1, m)
        denom = jnp.sum(q_prime * k_sum, axis=-1, keepdims=True)        # (S, 1)
        # contract axis 0 of both operands -> (m, dh); no materialised transpose.
        context = lax.dot_general(k_prime, v, (((0,), (0,)), ((), ())),
                                  preferred_element_type=jnp.float32)
        num = jnp.dot(q_prime, context, preferred_element_type=jnp.float32)  # (S, dh)

        inv = pl.reciprocal(denom, approx=True)        # EUP estimate ...
        inv = inv * (2.0 - denom * inv)                # ... + one Newton step (~f32)
        outs.append(num * inv)

    # single lane-dense (S, D) store, already in (B*S, D) layout -> no merge pass.
    o_ref[...] = jnp.concatenate(outs, axis=-1).astype(o_ref.dtype)


def favor_attention(qkv, proj, *, batch, seq, nhead):
    """qkv: (B*S, 3*D) fused projection; proj: (m, dh).  Returns (B*S, D) float32."""
    BS, threeD = qkv.shape
    d_model = threeD // 3
    dh = d_model // nhead
    m = proj.shape[0]
    proj_t = proj.T.astype(jnp.float32)                        # (dh, m), resident

    return pl.pallas_call(
        functools.partial(_favor_attention_kernel, nhead=nhead, eps=1e-4),
        out_shape=jax.ShapeDtypeStruct((BS, d_model), jnp.float32),
        grid_spec=pltpu.PrefetchScalarGridSpec(
            num_scalar_prefetch=0,
            grid=(batch,),
            in_specs=[
                pl.BlockSpec((seq, threeD), lambda b: (b, 0)),
                pl.BlockSpec((dh, m), lambda b: (0, 0)),
            ],
            out_specs=pl.BlockSpec((seq, d_model), lambda b: (b, 0)),
        ),
        compiler_params=pltpu.CompilerParams(
            dimension_semantics=("parallel",), vmem_limit_bytes=_VMEM_LIMIT),
    )(qkv, proj_t)


# ----------------------------------------------------------------------------
# Full block forward (no layout glue: no head split / merge transposes)
# ----------------------------------------------------------------------------

def performer_ffn_block_forward(src, params, nhead):
    B, S, D = src.shape
    x = src.reshape(B * S, D)

    # --- attention branch: LN1 fused into the qkv matmul (autocast off -> f32) ---
    qkv = matmul_bias(x, params["w_qkv"], params["b_qkv"],
                      ln=(params["ln1_g"], params["ln1_b"]),
                      out_dtype=jnp.float32)

    attn = favor_attention(qkv, params["proj"], batch=B, seq=S, nhead=nhead)

    # out projection + nan_to_num + first residual (dropout1 = identity)
    x1 = matmul_bias(attn, params["w_out"], params["b_out"],
                     nan_clean=True, residual=x, out_dtype=src.dtype)

    # --- FFN branch: LN2 fused into linear1; gelu epilogue; linear2 + residual ---
    h = matmul_bias(x1, params["w_ff1"], params["b_ff1"],
                    ln=(params["ln2_g"], params["ln2_b"]), activation="gelu")
    out = matmul_bias(h, params["w_ff2"], params["b_ff2"], residual=x1)

    return out.reshape(B, S, D)


# ----------------------------------------------------------------------------
# Pure-JAX reference (same math) for the self-check
# ----------------------------------------------------------------------------

def reference_forward(src, params, nhead):
    B, S, D = src.shape
    dh = D // nhead
    m = params["proj"].shape[0]
    x = src.reshape(B * S, D).astype(jnp.float32)

    def ln(t, g, b):
        mu = jnp.mean(t, -1, keepdims=True)
        var = jnp.mean((t - mu) ** 2, -1, keepdims=True)
        return (t - mu) / jnp.sqrt(var + 1e-5) * g + b

    xn = ln(x, params["ln1_g"], params["ln1_b"])
    qkv = xn @ params["w_qkv"] + params["b_qkv"]
    q, k, v = jnp.split(qkv, 3, axis=-1)

    def heads(t):
        return t.reshape(B, S, nhead, dh).transpose(0, 2, 1, 3)

    q, k, v = heads(q), heads(k), heads(v)                      # (B, H, S, dh)
    dn = dh ** -0.25
    ratio = m ** -0.5
    eps = 1e-4
    proj = params["proj"]                                       # (m, dh)
    q_dash = jnp.einsum("bhsd,md->bhsm", q * dn, proj)
    k_dash = jnp.einsum("bhsd,md->bhsm", k * dn, proj)
    q_diag = 0.5 * dn * dn * jnp.sum(q * q, -1, keepdims=True)
    k_diag = 0.5 * dn * dn * jnp.sum(k * k, -1, keepdims=True)
    q_prime = ratio * (jnp.exp(q_dash - q_diag - jnp.max(q_dash, -1, keepdims=True)) + eps)
    k_prime = ratio * (jnp.exp(k_dash - k_diag
                               - jnp.max(k_dash, axis=(-1, -2), keepdims=True)) + eps)
    k_sum = jnp.sum(k_prime, axis=2)                            # (B, H, m)
    denom = jnp.einsum("bhsm,bhm->bhs", q_prime, k_sum)[..., None]
    context = jnp.einsum("bhsm,bhsd->bhmd", k_prime, v)
    attn = jnp.einsum("bhsm,bhmd->bhsd", q_prime, context) / denom
    attn = attn.transpose(0, 2, 1, 3).reshape(B * S, D)

    src2 = attn @ params["w_out"] + params["b_out"]
    src2 = jnp.nan_to_num(src2, nan=0.0, posinf=1.0, neginf=-1.0)
    x1 = x + src2

    x1n = ln(x1, params["ln2_g"], params["ln2_b"])
    h = _gelu_tanh(x1n @ params["w_ff1"] + params["b_ff1"])
    out = x1 + (h @ params["w_ff2"] + params["b_ff2"])
    return out.reshape(B, S, D)


# ----------------------------------------------------------------------------
# Parameter setup (init-time, plain JAX)
# ----------------------------------------------------------------------------

def gaussian_orthogonal_random_matrix(key, nb_rows, nb_cols):
    """Performer-style orthogonal random features with chi-distributed row norms."""
    n_blocks = nb_rows // nb_cols
    keys = jax.random.split(key, n_blocks + 2)
    blocks = []
    for i in range(n_blocks):
        g = jax.random.normal(keys[i], (nb_cols, nb_cols), jnp.float32)
        qm, _ = jnp.linalg.qr(g)
        blocks.append(qm.T)
    rem = nb_rows - n_blocks * nb_cols
    if rem > 0:
        g = jax.random.normal(keys[-2], (nb_cols, nb_cols), jnp.float32)
        qm, _ = jnp.linalg.qr(g)
        blocks.append(qm.T[:rem])
    mat = jnp.concatenate(blocks, axis=0)
    multiplier = jnp.linalg.norm(
        jax.random.normal(keys[-1], (nb_rows, nb_cols), jnp.float32), axis=-1)
    return multiplier[:, None] * mat


def init_params(key, d_model, nhead, dim_feedforward, nb_features):
    dh = d_model // nhead
    ks = jax.random.split(key, 8)
    s_in = 1.0 / math.sqrt(d_model)
    s_ff = 1.0 / math.sqrt(dim_feedforward)
    return {
        "ln1_g": jnp.ones((d_model,), jnp.float32),
        "ln1_b": jnp.zeros((d_model,), jnp.float32),
        "ln2_g": jnp.ones((d_model,), jnp.float32),
        "ln2_b": jnp.zeros((d_model,), jnp.float32),
        "w_qkv": jax.random.normal(ks[0], (d_model, 3 * d_model), jnp.float32) * s_in,
        "b_qkv": jnp.zeros((3 * d_model,), jnp.float32),   # performer to_q/k/v: no bias
        "w_out": jax.random.normal(ks[1], (d_model, d_model), jnp.float32) * s_in,
        "b_out": jax.random.normal(ks[2], (d_model,), jnp.float32) * 0.02,
        "w_ff1": jax.random.normal(ks[3], (d_model, dim_feedforward), jnp.float32) * s_in,
        "b_ff1": jax.random.normal(ks[4], (dim_feedforward,), jnp.float32) * 0.02,
        "w_ff2": jax.random.normal(ks[5], (dim_feedforward, d_model), jnp.float32) * s_ff,
        "b_ff2": jax.random.normal(ks[6], (d_model,), jnp.float32) * 0.02,
        "proj": gaussian_orthogonal_random_matrix(ks[7], nb_features, dh),
    }


# ----------------------------------------------------------------------------
# Demo / self-check
# ----------------------------------------------------------------------------

if __name__ == "__main__":
    B, S, D = 2, 8, 32          # batch, seq, d_model
    NHEAD = 4                    # dim_head = 8
    DIM_FF = 64                  # small feedforward for the test
    NB_FEATURES = 16             # ~ dim_head * log(dim_head)

    key = jax.random.PRNGKey(0)
    k_x, k_p = jax.random.split(key)
    src = jax.random.normal(k_x, (B, S, D), dtype=jnp.float32)
    params = init_params(k_p, D, NHEAD, DIM_FF, NB_FEATURES)

    out = performer_ffn_block_forward(src, params, NHEAD)
    out = jax.block_until_ready(out)

    with jax.default_matmul_precision("highest"):
        ref = reference_forward(src, params, NHEAD)
    ref = jax.block_until_ready(ref)

    assert out.shape == (B, S, D)
    assert bool(jnp.all(jnp.isfinite(out)))
    assert jnp.allclose(out, ref, atol=2e-3, rtol=2e-3), (
        f"max abs diff = {float(jnp.max(jnp.abs(out - ref)))}")

    print("KERNEL_OK")
</pallas_src>

<mosaic_0001>
module attributes {stable_mosaic.version = 11 : i64} {
  func.func @kernel(%arg0: i32, %arg1: i32, %arg2: i32, %arg3: memref<16x32xf32, #tpu.memory_space<vmem>>, %arg4: memref<1x32xf32, #tpu.memory_space<vmem>>, %arg5: memref<1x32xf32, #tpu.memory_space<vmem>>, %arg6: memref<32x96xf32, #tpu.memory_space<vmem>>, %arg7: memref<1x96xf32, #tpu.memory_space<vmem>>, %arg8: memref<16x96xf32, #tpu.memory_space<vmem>>, %arg9: memref<16x96xf32, #tpu.memory_space<vmem>>) attributes {dimension_semantics = [#tpu.dimension_semantics<parallel>, #tpu.dimension_semantics<parallel>, #tpu.dimension_semantics<arbitrary>], iteration_bounds = array<i64: 1, 1, 1>, scalar_prefetch = 0 : i64, scratch_operands = 1 : i64, tpu.core_type = #tpu.core_type<tc>, window_params = [{transform_indices = @transform_0, window_bounds = array<i64: 16, 32>}, {pipeline_mode = #tpu.pipeline_mode<synchronous>, transform_indices = @transform_1, window_bounds = array<i64: 1, 32>}, {pipeline_mode = #tpu.pipeline_mode<synchronous>, transform_indices = @transform_2, window_bounds = array<i64: 1, 32>}, {transform_indices = @transform_3, window_bounds = array<i64: 32, 96>}, {transform_indices = @transform_4, window_bounds = array<i64: 1, 96>}, {transform_indices = @transform_5, window_bounds = array<i64: 16, 96>}]} {
    %c0_i32 = arith.constant 0 : i32
    %0 = arith.cmpi eq, %arg2, %c0_i32 : i32
    %1 = arith.extui %0 : i1 to i32
    %c0_i32_0 = arith.constant 0 : i32
    %2 = arith.cmpi ne, %1, %c0_i32_0 : i32
    scf.if %2 {
      %cst_19 = arith.constant 0.000000e+00 : f32
      %36 = vector.broadcast %cst_19 : f32 to vector<16x96xf32>
      %c0_20 = arith.constant 0 : index
      %c0_21 = arith.constant 0 : index
      %37 = vector.load %arg9[%c0_20, %c0_21] : memref<16x96xf32, #tpu.memory_space<vmem>>, vector<16x96xf32>
      tpu.vector_store %arg9[%c0_20, %c0_21], %36 {strides = array<i32>} : memref<16x96xf32, #tpu.memory_space<vmem>>, vector<16x96xf32>,
    } else {
    }
    %c0 = arith.constant 0 : index
    %c0_1 = arith.constant 0 : index
    %3 = vector.load %arg3[%c0, %c0_1] : memref<16x32xf32, #tpu.memory_space<vmem>>, vector<16x32xf32>
    %cst = arith.constant dense<0.000000e+00> : vector<16xf32>
    %4 = vector.multi_reduction <add>, %3, %cst [1] : vector<16x32xf32> to vector<16xf32>
    %5 = vector.shape_cast %4 : vector<16xf32> to vector<16x1xf32>
    %cst_2 = arith.constant 3.200000e+01 : f32
    %6 = vector.broadcast %cst_2 : f32 to vector<16x1xf32>
    %7 = arith.divf %5, %6 : vector<16x1xf32>
    %8 = vector.broadcast %7 : vector<16x1xf32> to vector<16x32xf32>
    %9 = arith.subf %3, %8 : vector<16x32xf32>
    %10 = arith.mulf %9, %9 : vector<16x32xf32>
    %cst_3 = arith.constant dense<0.000000e+00> : vector<16xf32>
    %11 = vector.multi_reduction <add>, %10, %cst_3 [1] : vector<16x32xf32> to vector<16xf32>
    %12 = vector.shape_cast %11 : vector<16xf32> to vector<16x1xf32>
    %cst_4 = arith.constant 3.200000e+01 : f32
    %13 = vector.broadcast %cst_4 : f32 to vector<16x1xf32>
    %14 = arith.divf %12, %13 : vector<16x1xf32>
    %15 = vector.broadcast %7 : vector<16x1xf32> to vector<16x32xf32>
    %16 = arith.subf %3, %15 : vector<16x32xf32>
    %cst_5 = arith.constant 9.99999974E-6 : f32
    %17 = vector.broadcast %cst_5 : f32 to vector<16x1xf32>
    %18 = arith.addf %14, %17 : vector<16x1xf32>
    %19 = math.rsqrt %18 : vector<16x1xf32>
    %20 = vector.broadcast %19 : vector<16x1xf32> to vector<16x32xf32>
    %21 = arith.mulf %16, %20 : vector<16x32xf32>
    %c0_6 = arith.constant 0 : index
    %c0_7 = arith.constant 0 : index
    %22 = vector.load %arg4[%c0_6, %c0_7] : memref<1x32xf32, #tpu.memory_space<vmem>>, vector<1x32xf32>
    %23 = vector.broadcast %22 : vector<1x32xf32> to vector<16x32xf32>
    %24 = arith.mulf %21, %23 : vector<16x32xf32>
    %c0_8 = arith.constant 0 : index
    %c0_9 = arith.constant 0 : index
    %25 = vector.load %arg5[%c0_8, %c0_9] : memref<1x32xf32, #tpu.memory_space<vmem>>, vector<1x32xf32>
    %26 = vector.broadcast %25 : vector<1x32xf32> to vector<16x32xf32>
    %27 = arith.addf %24, %26 : vector<16x32xf32>
    %c0_10 = arith.constant 0 : index
    %c0_11 = arith.constant 0 : index
    %28 = vector.load %arg6[%c0_10, %c0_11] : memref<32x96xf32, #tpu.memory_space<vmem>>, vector<32x96xf32>
    %c0_12 = arith.constant 0 : index
    %c0_13 = arith.constant 0 : index
    %29 = vector.load %arg9[%c0_12, %c0_13] : memref<16x96xf32, #tpu.memory_space<vmem>>, vector<16x96xf32>
    %cst_14 = arith.constant dense<0.000000e+00> : vector<16x96xf32>
    %30 = tpu.matmul %27, %28, %cst_14 {dimension_numbers = #tpu.dot_dimension_numbers<[1], [0], [0], [1], [0, 0, 1, 1], [], []>} : vector<16x32xf32>, vector<32x96xf32>, vector<16x96xf32> -> vector<16x96xf32>
    %31 = arith.addf %29, %30 : vector<16x96xf32>
    %c0_15 = arith.constant 0 : index
    %c0_16 = arith.constant 0 : index
    %32 = vector.load %arg9[%c0_15, %c0_16] : memref<16x96xf32, #tpu.memory_space<vmem>>, vector<16x96xf32>
    tpu.vector_store %arg9[%c0_15, %c0_16], %31 {strides = array<i32>} : memref<16x96xf32, #tpu.memory_space<vmem>>, vector<16x96xf32>,
    %c0_i32_17 = arith.constant 0 : i32
    %33 = arith.cmpi eq, %arg2, %c0_i32_17 : i32
    %34 = arith.extui %33 : i1 to i32
    %c0_i32_18 = arith.constant 0 : i32
    %35 = arith.cmpi ne, %34, %c0_i32_18 : i32
    scf.if %35 {
      %c0_19 = arith.constant 0 : index
      %c0_20 = arith.constant 0 : index
      %36 = vector.load %arg9[%c0_19, %c0_20] : memref<16x96xf32, #tpu.memory_space<vmem>>, vector<16x96xf32>
      %c0_21 = arith.constant 0 : index
      %c0_22 = arith.constant 0 : index
      %37 = vector.load %arg7[%c0_21, %c0_22] : memref<1x96xf32, #tpu.memory_space<vmem>>, vector<1x96xf32>
      %38 = vector.broadcast %37 : vector<1x96xf32> to vector<16x96xf32>
      %39 = arith.addf %36, %38 : vector<16x96xf32>
      %c0_23 = arith.constant 0 : index
      %c0_24 = arith.constant 0 : index
      %40 = vector.load %arg8[%c0_23, %c0_24] : memref<16x96xf32, #tpu.memory_space<vmem>>, vector<16x96xf32>
      tpu.vector_store %arg8[%c0_23, %c0_24], %39 {strides = array<i32>} : memref<16x96xf32, #tpu.memory_space<vmem>>, vector<16x96xf32>,
    } else {
    }
    return
  }
  func.func @transform_0(%arg0: i32, %arg1: i32, %arg2: i32) -> (i32, i32) {
    %c0_i32 = arith.constant 0 : i32
    return %arg0, %arg2 : i32, i32
  }
  func.func @transform_1(%arg0: i32, %arg1: i32, %arg2: i32) -> (i32, i32) {
    %c0_i32 = arith.constant 0 : i32
    %c0_i32_0 = arith.constant 0 : i32
    %c0_i32_1 = arith.constant 0 : i32
    return %c0_i32, %c0_i32_0 : i32, i32
  }
  func.func @transform_2(%arg0: i32, %arg1: i32, %arg2: i32) -> (i32, i32) {
    %c0_i32 = arith.constant 0 : i32
    %c0_i32_0 = arith.constant 0 : i32
    %c0_i32_1 = arith.constant 0 : i32
    return %c0_i32, %c0_i32_0 : i32, i32
  }
  func.func @transform_3(%arg0: i32, %arg1: i32, %arg2: i32) -> (i32, i32) {
    %c0_i32 = arith.constant 0 : i32
    return %arg2, %arg1 : i32, i32
  }
  func.func @transform_4(%arg0: i32, %arg1: i32, %arg2: i32) -> (i32, i32) {
    %c0_i32 = arith.constant 0 : i32
    %c0_i32_0 = arith.constant 0 : i32
    return %c0_i32, %arg1 : i32, i32
  }
  func.func @transform_5(%arg0: i32, %arg1: i32, %arg2: i32) -> (i32, i32) {
    %c0_i32 = arith.constant 0 : i32
    return %arg0, %arg1 : i32, i32
  }
}

</mosaic_0001>

<llo_original>
// kernel: tpu_custom_call.1
$region0: #{tpu_custom_call.1}
  #allocation0 [shape = 'u32[]', space=smem, size = 0x4, offset = 0x4, fixed_abs, tag = 'smem constant byte address 0x4 - core index']
  #allocation1 [shape = 'u32[144,128]{1,0:T(1,128)}', space=vmem, size = 0x12000, scoped, tag = 'internal scratch']
  #allocation2 [shape = 'f32[16,96]{1,0:T(8,128)}', space=vmem, size = 0x2000, scoped, tag = 'scratch operand']
  %s0 = inlined_call_operand.hbm [shape: f32[16,32], index: 0, kind: input, shape index: {}]
  %s1 = inlined_call_operand.vmem [shape: f32[1,32], index: 1, kind: input, shape index: {}]
  %s2 = inlined_call_operand.vmem [shape: f32[1,32], index: 2, kind: input, shape index: {}]
  %s3 = inlined_call_operand.hbm [shape: f32[32,96], index: 3, kind: input, shape index: {}]
  %s4 = inlined_call_operand.vmem [shape: f32[1,96], index: 4, kind: input, shape index: {}]
  %s5 = inlined_call_operand.hbm [shape: f32[16,96], index: 5, kind: output, shape index: {}]
  %s6 = sld [smem:[#allocation0]]
  $region46: #{tpu_custom_call.1} parent=0
    _
  %s8 = ssub.s32 1, %s6
  %s9 = scalar_select 0, %s8, %s6
  $region1: #{tpu_custom_call.1} parent=0
    #allocation3 [shape = 'u8[8192]{0}', space=vmem, size = 0x2000, scoped, tag = 'input window, operand 0, single buffered']
    #allocation4 [shape = 's32[1]{0}', space=sflag, size = 0x4, scoped, tag = 'scoped memory for tpu_custom_call.1']
    #allocation5 [shape = 's32[1]{0}', space=sflag, size = 0x4, scoped, tag = 'scoped memory for tpu_custom_call.1']
    #allocation6 [shape = 'u8[16384]{0}', space=vmem, size = 0x4000, scoped, tag = 'input window, operand 3, single buffered']
    #allocation7 [shape = 's32[1]{0}', space=sflag, size = 0x4, scoped, tag = 'scoped memory for tpu_custom_call.1']
    #allocation8 [shape = 'u8[8192]{0}', space=vmem, size = 0x2000, scoped, tag = 'output window, operand 0, single buffered']
    %10 = vsyncpa [#allocation4], 0
    %11 = vsyncpa [#allocation7], 0
    %12 = vsyncpa [#allocation5], 0
    // Predicated region
    $region2: #{tpu_custom_call.1} parent=1 // pred_check
      _
    $region3: #{tpu_custom_call.1} parent=1 // pred_check_branch
      %14 = sbr.rel (0) target = $region5
    $region4: #{tpu_custom_call.1} parent=1 // pred_region
      %s16 = ssub.s32 256, 256
      %17 = vsyncadd [#allocation4], %s16
      %s18 = sshll.u32 [#allocation3], 4
      %s19 = int_to_ptr.vmem [resolvable:$true] %s18
      %24 = dma.hbm_to_vmem [thread:$0]  %s0, 256, %s19, [#allocation4], 128, 128, 8
    $region5: #{tpu_custom_call.1} parent=1 // pred_fallthru
      _
    // Predicated region
    $region6: #{tpu_custom_call.1} parent=1 // pred_check
      _
    $region7: #{tpu_custom_call.1} parent=1 // pred_check_branch
      %26 = sbr.rel (0) target = $region9
    $region8: #{tpu_custom_call.1} parent=1 // pred_region
      _
    $region9: #{tpu_custom_call.1} parent=1 // pred_fallthru
      _
    // Predicated region
    $region10: #{tpu_custom_call.1} parent=1 // pred_check
      _
    $region11: #{tpu_custom_call.1} parent=1 // pred_check_branch
      %28 = sbr.rel (0) target = $region13
    $region12: #{tpu_custom_call.1} parent=1 // pred_region
      _
    $region13: #{tpu_custom_call.1} parent=1 // pred_fallthru
      _
    // Predicated region
    $region14: #{tpu_custom_call.1} parent=1 // pred_check
      _
    $region15: #{tpu_custom_call.1} parent=1 // pred_check_branch
      %30 = sbr.rel (0) target = $region17
    $region16: #{tpu_custom_call.1} parent=1 // pred_region
      %s32 = ssub.s32 512, 512
      %33 = vsyncadd [#allocation7], %s32
      %s34 = sshll.u32 [#allocation6], 4
      %s35 = int_to_ptr.vmem [resolvable:$true] %s34
      %40 = dma.hbm_to_vmem [thread:$0]  %s3, 512, %s35, [#allocation7], 128, 128, 8
    $region17: #{tpu_custom_call.1} parent=1 // pred_fallthru
      _
    // Predicated region
    $region18: #{tpu_custom_call.1} parent=1 // pred_check
      _
    $region19: #{tpu_custom_call.1} parent=1 // pred_check_branch
      %42 = sbr.rel (0) target = $region21
    $region20: #{tpu_custom_call.1} parent=1 // pred_region
      _
    $region21: #{tpu_custom_call.1} parent=1 // pred_fallthru
      _
    // Predicated region
    $region22: #{tpu_custom_call.1} parent=1 // pred_check
      _
    $region23: #{tpu_custom_call.1} parent=1 // pred_check_branch
      %44 = sbr.rel (0) target = $region25
    $region24: #{tpu_custom_call.1} parent=1 // pred_region
      %45 = dma.done [#allocation4], 256
    $region25: #{tpu_custom_call.1} parent=1 // pred_fallthru
      _
    // Predicated region
    $region26: #{tpu_custom_call.1} parent=1 // pred_check
      _
    $region27: #{tpu_custom_call.1} parent=1 // pred_check_branch
      %47 = sbr.rel (0) target = $region29
    $region28: #{tpu_custom_call.1} parent=1 // pred_region
      %48 = dma.done [#allocation7], 512
    $region29: #{tpu_custom_call.1} parent=1 // pred_fallthru
      _
    %p49 = scmp.eq.s32.totalorder 0, 0
    // Predicated region
    $region30: #{tpu_custom_call.1} parent=1 // pred_check
      %p50 = pneg %p49
    $region31: #{tpu_custom_call.1} parent=1 // pred_check_branch
      %52 = sbr.rel (%p50) target = $region33
    $region32: #{tpu_custom_call.1} parent=1 // pred_region
      %vm53 = vcmask 785408
      %54 = vst.msk [vmem:[#allocation2] sm:$0xff] %vm53, 0.0
      %55 = vst.msk [vmem:[#allocation2 + $0x8] sm:$0xff] %vm53, 0.0
    $region33: #{tpu_custom_call.1} parent=1 // pred_fallthru
      _
    %v56 = vld [vmem:[#allocation3] sm:$0xff]
    %v57 = vld [vmem:[#allocation3 + $0x8] sm:$0xff]
    %vm58 = vcmask 261120
    %v59 = vsel %vm58, %v56, 0.0
    %60 = vadd.xlane.f32.xlu0 %v59
    %v61 = vpop.xlane.xlu0 %60
    %v62 = vsel %vm58, %v57, 0.0
    %63 = vadd.xlane.f32.xlu0 %v62
    %v64 = vpop.xlane.xlu0 %63
    %v65 = vrcp.pop 32.0
    %v66 = vmul.f32 %v61, %v65
    %v67 = vmul.f32 %v64, %v65
    %v68 = vsub.f32 %v56, %v66
    %v69 = vsub.f32 %v57, %v67
    %v70 = vmul.f32 %v68, %v68
    %v71 = vmul.f32 %v69, %v69
    %v72 = vsel %vm58, %v70, 0.0
    %73 = vadd.xlane.f32.xlu0 %v72
    %v74 = vpop.xlane.xlu0 %73
    %v75 = vsel %vm58, %v71, 0.0
    %76 = vadd.xlane.f32.xlu0 %v75
    %v77 = vpop.xlane.xlu0 %76
    %v78 = vmul.f32 %v74, %v65
    %v79 = vmul.f32 %v77, %v65
    %v80 = vadd.f32 %v78, 1e-05
    %v81 = vadd.f32 %v79, 1e-05
    %v82 = vrsqrt.pop %v80
    %v83 = vrsqrt.pop %v81
    %v84 = vmul.f32 %v68, %v82
    %v85 = vmul.f32 %v69, %v83
    %v86 = vld [vmem:[%s1] sm:$0x1]
    %v88 = vlaneseq
    %v89 = vshrl.u32 %v88, 7
    %v90 = vsub.s32 0, %v89
    %v91 = vrot.slane %v86, %v90
    %v93 = vmul.f32 %v84, %v91
    %v94 = vmul.f32 %v85, %v91
    %v95 = vld [vmem:[%s2] sm:$0x1]
    %v97 = vlaneseq
    %v98 = vshrl.u32 %v97, 7
    %v99 = vsub.s32 0, %v98
    %v100 = vrot.slane %v95, %v99
    %v102 = vadd.f32 %v93, %v100
    %v103 = vadd.f32 %v94, %v100
    %v104 = vld [vmem:[#allocation6] sm:$0xff]
    %v105 = vld [vmem:[#allocation6 + $0x8] sm:$0xff]
    %v106 = vld [vmem:[#allocation6 + $0x10] sm:$0xff]
    %v107 = vld [vmem:[#allocation6 + $0x18] sm:$0xff]
    %v108 = vld [vmem:[#allocation2] sm:$0xff]
    %v109 = vld [vmem:[#allocation2 + $0x8] sm:$0xff]
    %v111 = vsel %vm58, %v102, 0
    %v114 = vsel %vm58, %v103, 0
    %116 = vmatprep.subr.mxu0 0.0
    %117 = vmatpush1.msra.mxu0 0.0
    %118 = vmatprep.subr.mxu0 0.0
    %119 = vmatpush1.msra.mxu0 0.0
    %120 = vmatprep.subr.mxu0 0.0
    %121 = vmatpush1.msra.mxu0 0.0
    %122 = vmatprep.subr.mxu0 0.0
    %123 = vmatpush1.msra.mxu0 0.0
    %124 = vmatprep.subr.mxu0 0.0
    %125 = vmatpush1.msra.mxu0 0.0
    %126 = vmatprep.subr.mxu0 0.0
    %127 = vmatpush1.msra.mxu0 0.0
    %128 = vmatprep.subr.mxu0 0.0
    %129 = vmatpush1.msra.mxu0 0.0
    %130 = vmatprep.subr.mxu0 0.0
    %131 = vmatpush1.msra.mxu0 0.0
    %132 = vmatprep.subr.mxu0 0.0
    %133 = vmatpush1.msra.mxu0 0.0
    %134 = vmatprep.subr.mxu0 0.0
    %135 = vmatpush1.msra.mxu0 0.0
    %136 = vmatprep.subr.mxu0 0.0
    %137 = vmatpush1.msra.mxu0 0.0
    %138 = vmatprep.subr.mxu0 0.0
    %139 = vmatpush1.msra.mxu0 0.0
    %140 = vmatprep.subr.mxu0 0.0
    %141 = vmatpush1.msra.mxu0 %v107
    %142 = vmatprep.subr.mxu0 0.0
    %143 = vmatpush1.msra.mxu0 %v106
    %144 = vmatprep.subr.mxu0 0.0
    %145 = vmatpush1.msra.mxu0 %v105
    %146 = vmatprep.subr.mxu0 0.0
    %147 = vmatpush1.msra.mxu0 %v104
    %148 = vmatprep.subr.mxu0 0.0
    %149 = vmatpush2.msra.mxu0 0.0
    %150 = vmatprep.subr.mxu0 0.0
    %151 = vmatpush2.msra.mxu0 0.0
    %152 = vmatprep.subr.mxu0 0.0
    %153 = vmatpush2.msra.mxu0 0.0
    %154 = vmatprep.subr.mxu0 0.0
    %155 = vmatpush2.msra.mxu0 0.0
    %156 = vmatprep.subr.mxu0 0.0
    %157 = vmatpush2.msra.mxu0 0.0
    %158 = vmatprep.subr.mxu0 0.0
    %159 = vmatpush2.msra.mxu0 0.0
    %160 = vmatprep.subr.mxu0 0.0
    %161 = vmatpush2.msra.mxu0 0.0
    %162 = vmatprep.subr.mxu0 0.0
    %163 = vmatpush2.msra.mxu0 0.0
    %164 = vmatprep.subr.mxu0 0.0
    %165 = vmatpush2.msra.mxu0 0.0
    %166 = vmatprep.subr.mxu0 0.0
    %167 = vmatpush2.msra.mxu0 0.0
    %168 = vmatprep.subr.mxu0 0.0
    %169 = vmatpush2.msra.mxu0 0.0
    %170 = vmatprep.subr.mxu0 0.0
    %171 = vmatpush2.msra.mxu0 0.0
    %172 = vmatprep.subr.mxu0 0.0
    %173 = vmatpush2.msra.mxu0 0.0
    %174 = vmatprep.subr.mxu0 0.0
    %175 = vmatpush2.msra.mxu0 0.0
    %176 = vmatprep.subr.mxu0 0.0
    %177 = vmatpush2.msra.mxu0 0.0
    %178 = vmatprep.subr.mxu0 0.0
    %179 = vmatpush2.msra.mxu0 0.0
    %180 = vmatprep.mubr.f32.mxu0 0.0
    %181 = vmatmul.mubr.f32.gmra.mxu0 %v111
    %v182 = vpop.f32.mrf.mxu0
    %v183 = vadd.f32 0.0, %v182
    %v184 = vpop.f32.mrf.mxu0
    %185 = vmatprep.mubr.f32.mxu0 0.0
    %186 = vmatmul.mubr.f32.gmra.mxu0 %v114
    %v187 = vpop.f32.mrf.mxu0
    %v188 = vadd.f32 0.0, %v187
    %v189 = vpop.f32.mrf.mxu0
    %190 = vdwg.mxu0
    %v191 = vadd.f32 %v108, %v183
    %v192 = vadd.f32 %v109, %v188
    %vm193 = vcmask 785408
    %194 = vst.msk [vmem:[#allocation2] sm:$0xff] %vm193, %v191
    %195 = vst.msk [vmem:[#allocation2 + $0x8] sm:$0xff] %vm193, %v192
    // Predicated region
    $region34: #{tpu_custom_call.1} parent=1 // pred_check
      %p196 = pneg %p49
    $region35: #{tpu_custom_call.1} parent=1 // pred_check_branch
      %198 = sbr.rel (%p196) target = $region37
    $region36: #{tpu_custom_call.1} parent=1 // pred_region
      %v199 = vld [vmem:[#allocation2] sm:$0xff]
      %v200 = vld [vmem:[#allocation2 + $0x8] sm:$0xff]
      %v201 = vld [vmem:[%s4] sm:$0x1]
      %v203 = vlaneseq
      %v204 = vshrl.u32 %v203, 7
      %v205 = vsub.s32 0, %v204
      %v206 = vrot.slane %v201, %v205
      %v208 = vadd.f32 %v199, %v206
      %v209 = vadd.f32 %v200, %v206
      %210 = vst.msk [vmem:[#allocation8] sm:$0xff] %vm193, %v208
      %211 = vst.msk [vmem:[#allocation8 + $0x8] sm:$0xff] %vm193, %v209
    $region37: #{tpu_custom_call.1} parent=1 // pred_fallthru
      _
    // Predicated region
    $region38: #{tpu_custom_call.1} parent=1 // pred_check
      _
    $region39: #{tpu_custom_call.1} parent=1 // pred_check_branch
      %213 = sbr.rel (0) target = $region41
    $region40: #{tpu_custom_call.1} parent=1 // pred_region
      %s215 = ssub.s32 256, 256
      %216 = vsyncadd [#allocation5], %s215
      %s217 = sshll.u32 [#allocation8], 4
      %s218 = int_to_ptr.vmem [resolvable:$true] %s217
      %223 = dma.vmem_to_hbm [thread:$0]  %s218, 256, %s5, [#allocation5], 128, 128, 8
    $region41: #{tpu_custom_call.1} parent=1 // pred_fallthru
      _
    // Predicated region
    $region42: #{tpu_custom_call.1} parent=1 // pred_check
      _
    $region43: #{tpu_custom_call.1} parent=1 // pred_check_branch
      %225 = sbr.rel (0) target = $region45
    $region44: #{tpu_custom_call.1} parent=1 // pred_region
      %226 = dma.done [#allocation5], 256
    $region45: #{tpu_custom_call.1} parent=1 // pred_fallthru
      _
    %227 = vsyncpa [#allocation4], 1
    %228 = vsyncpa [#allocation7], 1
    %229 = vsyncpa [#allocation5], 1

</llo_original>
